<compile_context>
chip_gen: v6e
topology: v6e:2x2x1
jax: 0.10.0
libtpu: 0.0.40
codegen_flags: <defaults>
</compile_context>

<pallas_src>
import functools

import numpy as np
import jax
import jax.numpy as jnp
from jax.experimental import pallas as pl
from jax.experimental.pallas import tpu as pltpu


_NEG_LOGVAR_PAD = -30.0   # padded logvar entries -> sigma ~ 3e-7 (numerically inert)


# ---------------------------------------------------------------------------
# Kernels
# ---------------------------------------------------------------------------
def _bayes_sample_kernel(x_ref, wmu_ref, wlv_ref, epsw_ref,
                         bmu_ref, blv_ref, epsb_ref,
                         o_ref, acc_ref, *, matmul_dtype):
    """One (i, j, k) grid step of y = x @ (mu + sigma*eps) + b_sampled.

    Weights are stored K-major: wmu/wlv/epsw tiles are (tk, tn), so the MXU gets
    the canonical (M,K)@(K,N) operands with no in-kernel transpose.
    """
    k = pl.program_id(2)

    @pl.when(k == 0)
    def _init():
        acc_ref[...] = jnp.zeros_like(acc_ref)

    # Fused reparameterization in f32 (keeps sigma precision), then cast the MXU
    # feed to bf16 (default) with f32 accumulation.
    w = wmu_ref[...] + jnp.exp(0.5 * wlv_ref[...]) * epsw_ref[...]      # (tk, tn)
    x_tile = x_ref[...]                                                  # (tm, tk)
    if matmul_dtype is not None:
        x_tile = x_tile.astype(matmul_dtype)
        w = w.astype(matmul_dtype)

    acc_ref[...] += jnp.dot(x_tile, w, preferred_element_type=jnp.float32)

    @pl.when(k == pl.num_programs(2) - 1)
    def _finalize():
        # Bias reparameterization: once per (i, j), only in the K-finalize block.
        b = bmu_ref[...] + jnp.exp(0.5 * blv_ref[...]) * epsb_ref[...]   # (1, tn)
        o_ref[...] = (acc_ref[...] + b).astype(o_ref.dtype)


def _mean_linear_kernel(x_ref, wmu_ref, bmu_ref, o_ref, acc_ref, *, matmul_dtype):
    """sample=False / eval path: y = x @ weight_mu.T + bias_mu (no exp, no eps)."""
    k = pl.program_id(2)

    @pl.when(k == 0)
    def _init():
        acc_ref[...] = jnp.zeros_like(acc_ref)

    x_tile = x_ref[...]
    w = wmu_ref[...]
    if matmul_dtype is not None:
        x_tile = x_tile.astype(matmul_dtype)
        w = w.astype(matmul_dtype)

    acc_ref[...] += jnp.dot(x_tile, w, preferred_element_type=jnp.float32)

    @pl.when(k == pl.num_programs(2) - 1)
    def _finalize():
        o_ref[...] = (acc_ref[...] + bmu_ref[...]).astype(o_ref.dtype)


# ---------------------------------------------------------------------------
# Host-side helpers
# ---------------------------------------------------------------------------
def _round_up(v, m):
    return ((v + m - 1) // m) * m


def _pick_tile(dim_padded, granule, cap):
    """Largest multiple of `granule` that divides `dim_padded` and is <= cap."""
    cap = max(granule, min(cap, dim_padded))
    best = granule
    t = granule
    while t <= cap:
        if dim_padded % t == 0:
            best = t
        t += granule
    return best


def _pad2d(a, rows, cols, value=0.0):
    r, c = a.shape
    if (r, c) == (rows, cols):
        return a
    return jnp.pad(a, ((0, rows - r), (0, cols - c)), constant_values=value)


def prepare_bayesian_linear_params(weight_mu, weight_logvar, bias_mu, bias_logvar):
    """One-time (init-time) parameter prep: K-major layout, hardware-min padding.

    Hoisting this out of the forward removes a full pad/cast HBM round-trip of the
    weight matrices per call.
    """
    out_features, in_features = weight_mu.shape
    kp = _round_up(in_features, 128)     # lane-dense contraction K
    np_ = _round_up(out_features, 128)   # lane-dense output N
    f32 = jnp.float32
    return {
        "in_features": in_features,
        "out_features": out_features,
        "kp": kp,
        "np_": np_,
        # K-major (Kp, Np): canonical MXU (K, N) operand, no per-tile transpose.
        "wmu": _pad2d(jnp.asarray(weight_mu, f32).T, kp, np_, 0.0),
        "wlv": _pad2d(jnp.asarray(weight_logvar, f32).T, kp, np_, _NEG_LOGVAR_PAD),
        "bmu": _pad2d(jnp.asarray(bias_mu, f32).reshape(1, -1), 1, np_, 0.0),
        "blv": _pad2d(jnp.asarray(bias_logvar, f32).reshape(1, -1), 1, np_,
                      _NEG_LOGVAR_PAD),
    }


def bayesian_linear(params, x, *, key=None, sample=True, training=True,
                    tm=512, tn=256, tk=512, matmul_dtype=jnp.bfloat16):
    """Pallas-TPU implementation of BayesianLinear.forward (F.linear semantics)."""
    batch, in_features = x.shape
    assert in_features == params["in_features"]
    kp, np_ = params["kp"], params["np_"]
    out_features = params["out_features"]

    # ---- tile sizes: divisors of the (hardware-min) padded dims -------------
    mp = _round_up(batch, 8)
    tm = _pick_tile(mp, 8, tm)
    tn = _pick_tile(np_, 128, tn)
    tk = _pick_tile(kp, 128, tk)
    grid = (mp // tm, np_ // tn, kp // tk)    # K (reduction) is the last axis

    x_p = _pad2d(jnp.asarray(x, jnp.float32), mp, kp)

    compiler_params = pltpu.CompilerParams(
        dimension_semantics=("parallel", "parallel", "arbitrary"),
        vmem_limit_bytes=32 * 1024 * 1024)

    out_shape = jax.ShapeDtypeStruct((mp, np_), x.dtype)
    scratch = [pltpu.VMEM((tm, tn), jnp.float32)]

    x_spec = pl.BlockSpec((tm, tk), lambda i, j, k: (i, k))
    w_spec = pl.BlockSpec((tk, tn), lambda i, j, k: (k, j))
    b_spec = pl.BlockSpec((1, tn), lambda i, j, k: (0, j))
    o_spec = pl.BlockSpec((tm, tn), lambda i, j, k: (i, j))

    if sample and training:
        if key is None:
            raise ValueError("bayesian_linear: a PRNG `key` is required when sampling.")
        kw, kb = jax.random.split(key)
        # One weight/bias draw per forward call (PyTorch semantics): drawn once in
        # the wrapper, streamed to the kernel, reparameterization fused in-kernel.
        eps_w = jax.random.normal(kw, (kp, np_), jnp.float32)
        eps_b = jax.random.normal(kb, (1, np_), jnp.float32)

        grid_spec = pltpu.PrefetchScalarGridSpec(
            num_scalar_prefetch=0,
            grid=grid,
            in_specs=[x_spec, w_spec, w_spec, w_spec, b_spec, b_spec, b_spec],
            out_specs=o_spec,
            scratch_shapes=scratch)

        cost = pl.CostEstimate(
            flops=2 * mp * np_ * kp + 3 * grid[0] * np_ * kp,
            transcendentals=grid[0] * np_ * kp,
            bytes_accessed=4 * (grid[1] * mp * kp + 3 * grid[0] * np_ * kp
                                + mp * np_ + 3 * np_))

        y_p = pl.pallas_call(
            functools.partial(_bayes_sample_kernel, matmul_dtype=matmul_dtype),
            out_shape=out_shape,
            grid_spec=grid_spec,
            compiler_params=compiler_params,
            cost_estimate=cost,
        )(x_p, params["wmu"], params["wlv"], eps_w,
          params["bmu"], params["blv"], eps_b)
    else:
        grid_spec = pltpu.PrefetchScalarGridSpec(
            num_scalar_prefetch=0,
            grid=grid,
            in_specs=[x_spec, w_spec, b_spec],
            out_specs=o_spec,
            scratch_shapes=scratch)

        cost = pl.CostEstimate(
            flops=2 * mp * np_ * kp,
            transcendentals=0,
            bytes_accessed=4 * (grid[1] * mp * kp + grid[0] * np_ * kp
                                + mp * np_ + np_))

        y_p = pl.pallas_call(
            functools.partial(_mean_linear_kernel, matmul_dtype=matmul_dtype),
            out_shape=out_shape,
            grid_spec=grid_spec,
            compiler_params=compiler_params,
            cost_estimate=cost,
        )(x_p, params["wmu"], params["bmu"])

    return y_p[:batch, :out_features]


# ---------------------------------------------------------------------------
# Demo / self-test
# ---------------------------------------------------------------------------
if __name__ == "__main__":
    # Small shapes consistent with BayesianLinear(in_features=32, out_features=16).
    batch, in_features, out_features = 4, 32, 16

    root = jax.random.PRNGKey(0)
    k_wm, k_wl, k_bm, k_bl, k_x, k_noise = jax.random.split(root, 6)

    # Deterministic parameter init mirroring the torch __init__.
    weight_mu = jax.random.normal(k_wm, (out_features, in_features), jnp.float32) * 0.1
    weight_logvar = (jax.random.normal(k_wl, (out_features, in_features), jnp.float32)
                     * 0.1 - 5.0)
    bias_mu = jax.random.normal(k_bm, (out_features,), jnp.float32) * 0.1
    bias_logvar = jax.random.normal(k_bl, (out_features,), jnp.float32) * 0.1 - 5.0
    x = jax.random.normal(k_x, (batch, in_features), jnp.float32)

    params = prepare_bayesian_linear_params(weight_mu, weight_logvar,
                                            bias_mu, bias_logvar)

    # ------------- mean / eval path (sample=False) --------------------------
    # f32 MXU feed for a tight numerical check, then the default bf16 feed.
    y_mean_f32 = bayesian_linear(params, x, sample=False, matmul_dtype=None)
    y_mean_bf16 = bayesian_linear(params, x, sample=False)
    jax.block_until_ready((y_mean_f32, y_mean_bf16))

    x64 = np.asarray(x, np.float64)
    y_mean_ref = x64 @ np.asarray(weight_mu, np.float64).T + np.asarray(bias_mu, np.float64)
    assert y_mean_f32.shape == (batch, out_features)
    assert np.allclose(np.asarray(y_mean_f32, np.float64), y_mean_ref,
                       atol=2e-4, rtol=2e-4), "mean path (f32 feed) mismatch"
    assert np.allclose(np.asarray(y_mean_bf16, np.float64), y_mean_ref,
                       atol=5e-2, rtol=5e-2), "mean path (bf16 feed) mismatch"

    # ------------- sampled path (sample=True, training=True) ----------------
    y_s1 = bayesian_linear(params, x, key=k_noise, sample=True, training=True)
    y_s2 = bayesian_linear(params, x, key=k_noise, sample=True, training=True)
    y_s3 = bayesian_linear(params, x, key=jax.random.PRNGKey(123),
                           sample=True, training=True)
    jax.block_until_ready((y_s1, y_s2, y_s3))

    s1 = np.asarray(y_s1, np.float64)
    assert y_s1.shape == (batch, out_features)
    assert np.all(np.isfinite(s1))
    # Deterministic given the key (single draw per forward).
    assert np.array_equal(np.asarray(y_s1), np.asarray(y_s2))
    # A different key gives a different sample.
    assert not np.array_equal(np.asarray(y_s1), np.asarray(y_s3))

    # Statistical sanity: per-element deviation from the mean output is Gaussian
    # with std = sqrt(x^2 @ exp(weight_logvar).T + exp(bias_logvar)); require
    # < 8 sigma and confirm noise was actually applied.
    noise_std = np.sqrt(
        (x64 ** 2) @ np.exp(np.asarray(weight_logvar, np.float64)).T
        + np.exp(np.asarray(bias_logvar, np.float64)))
    diff = s1 - y_mean_ref
    assert np.max(np.abs(diff)) > 1e-3, "sampling produced no noise"
    assert np.all(np.abs(diff) <= 8.0 * noise_std + 5e-3), "sampled output outside 8 sigma"

    # TODO(synk): kl_divergence() is a training-time scalar reduction over the
    # parameters, not part of forward(); it stays in plain JAX if ever needed.

    print("KERNEL_OK")
</pallas_src>

<mosaic_0001>
module attributes {stable_mosaic.version = 11 : i64} {
  func.func @_mean_linear_kernel(%arg0: i32, %arg1: i32, %arg2: i32, %arg3: memref<8x128xf32, #tpu.memory_space<vmem>>, %arg4: memref<128x128xf32, #tpu.memory_space<vmem>>, %arg5: memref<1x128xf32, #tpu.memory_space<vmem>>, %arg6: memref<8x128xf32, #tpu.memory_space<vmem>>, %arg7: memref<8x128xf32, #tpu.memory_space<vmem>>) attributes {dimension_semantics = [#tpu.dimension_semantics<parallel>, #tpu.dimension_semantics<parallel>, #tpu.dimension_semantics<arbitrary>], iteration_bounds = array<i64: 1, 1, 1>, scalar_prefetch = 0 : i64, scratch_operands = 1 : i64, tpu.core_type = #tpu.core_type<tc>, window_params = [{transform_indices = @transform_0, window_bounds = array<i64: 8, 128>}, {transform_indices = @transform_1, window_bounds = array<i64: 128, 128>}, {transform_indices = @transform_2, window_bounds = array<i64: 1, 128>}, {transform_indices = @transform_3, window_bounds = array<i64: 8, 128>}]} {
    %c0_i32 = arith.constant 0 : i32
    %0 = arith.cmpi eq, %arg2, %c0_i32 : i32
    %1 = arith.extui %0 : i1 to i32
    %c0_i32_0 = arith.constant 0 : i32
    %2 = arith.cmpi ne, %1, %c0_i32_0 : i32
    scf.if %2 {
      %cst_10 = arith.constant 0.000000e+00 : f32
      %12 = vector.broadcast %cst_10 : f32 to vector<8x128xf32>
      %c0_11 = arith.constant 0 : index
      %c0_12 = arith.constant 0 : index
      %13 = vector.load %arg7[%c0_11, %c0_12] : memref<8x128xf32, #tpu.memory_space<vmem>>, vector<8x128xf32>
      tpu.vector_store %arg7[%c0_11, %c0_12], %12 {strides = array<i32>} : memref<8x128xf32, #tpu.memory_space<vmem>>, vector<8x128xf32>,
    } else {
    }
    %c0 = arith.constant 0 : index
    %c0_1 = arith.constant 0 : index
    %3 = vector.load %arg3[%c0, %c0_1] : memref<8x128xf32, #tpu.memory_space<vmem>>, vector<8x128xf32>
    %c0_2 = arith.constant 0 : index
    %c0_3 = arith.constant 0 : index
    %4 = vector.load %arg4[%c0_2, %c0_3] : memref<128x128xf32, #tpu.memory_space<vmem>>, vector<128x128xf32>
    %c0_4 = arith.constant 0 : index
    %c0_5 = arith.constant 0 : index
    %5 = vector.load %arg7[%c0_4, %c0_5] : memref<8x128xf32, #tpu.memory_space<vmem>>, vector<8x128xf32>
    %cst = arith.constant dense<0.000000e+00> : vector<8x128xf32>
    %6 = tpu.matmul %3, %4, %cst {dimension_numbers = #tpu.dot_dimension_numbers<[1], [0], [0], [1], [0, 0, 1, 1], [], []>} : vector<8x128xf32>, vector<128x128xf32>, vector<8x128xf32> -> vector<8x128xf32>
    %7 = arith.addf %5, %6 : vector<8x128xf32>
    %c0_6 = arith.constant 0 : index
    %c0_7 = arith.constant 0 : index
    %8 = vector.load %arg7[%c0_6, %c0_7] : memref<8x128xf32, #tpu.memory_space<vmem>>, vector<8x128xf32>
    tpu.vector_store %arg7[%c0_6, %c0_7], %7 {strides = array<i32>} : memref<8x128xf32, #tpu.memory_space<vmem>>, vector<8x128xf32>,
    %c0_i32_8 = arith.constant 0 : i32
    %9 = arith.cmpi eq, %arg2, %c0_i32_8 : i32
    %10 = arith.extui %9 : i1 to i32
    %c0_i32_9 = arith.constant 0 : i32
    %11 = arith.cmpi ne, %10, %c0_i32_9 : i32
    scf.if %11 {
      %c0_10 = arith.constant 0 : index
      %c0_11 = arith.constant 0 : index
      %12 = vector.load %arg7[%c0_10, %c0_11] : memref<8x128xf32, #tpu.memory_space<vmem>>, vector<8x128xf32>
      %c0_12 = arith.constant 0 : index
      %c0_13 = arith.constant 0 : index
      %13 = vector.load %arg5[%c0_12, %c0_13] : memref<1x128xf32, #tpu.memory_space<vmem>>, vector<1x128xf32>
      %14 = vector.broadcast %13 : vector<1x128xf32> to vector<8x128xf32>
      %15 = arith.addf %12, %14 : vector<8x128xf32>
      %c0_14 = arith.constant 0 : index
      %c0_15 = arith.constant 0 : index
      %16 = vector.load %arg6[%c0_14, %c0_15] : memref<8x128xf32, #tpu.memory_space<vmem>>, vector<8x128xf32>
      tpu.vector_store %arg6[%c0_14, %c0_15], %15 {strides = array<i32>} : memref<8x128xf32, #tpu.memory_space<vmem>>, vector<8x128xf32>,
    } else {
    }
    return
  }
  func.func @transform_0(%arg0: i32, %arg1: i32, %arg2: i32) -> (i32, i32) {
    %c0_i32 = arith.constant 0 : i32
    return %arg0, %arg2 : i32, i32
  }
  func.func @transform_1(%arg0: i32, %arg1: i32, %arg2: i32) -> (i32, i32) {
    %c0_i32 = arith.constant 0 : i32
    return %arg2, %arg1 : i32, i32
  }
  func.func @transform_2(%arg0: i32, %arg1: i32, %arg2: i32) -> (i32, i32) {
    %c0_i32 = arith.constant 0 : i32
    %c0_i32_0 = arith.constant 0 : i32
    return %c0_i32, %arg1 : i32, i32
  }
  func.func @transform_3(%arg0: i32, %arg1: i32, %arg2: i32) -> (i32, i32) {
    %c0_i32 = arith.constant 0 : i32
    return %arg0, %arg1 : i32, i32
  }
}

</mosaic_0001>

<llo_original>
// kernel: tpu_custom_call.1
$region0: #{tpu_custom_call.1}
  #allocation0 [shape = 'u32[]', space=smem, size = 0x4, offset = 0x4, fixed_abs, tag = 'smem constant byte address 0x4 - core index']
  #allocation1 [shape = 'u32[144,128]{1,0:T(1,128)}', space=vmem, size = 0x12000, scoped, tag = 'internal scratch']
  #allocation2 [shape = 'f32[8,128]{1,0:T(8,128)}', space=vmem, size = 0x1000, scoped, tag = 'scratch operand']
  %s0 = inlined_call_operand.hbm [shape: f32[8,128], index: 0, kind: input, shape index: {}]
  %s1 = inlined_call_operand.hbm [shape: f32[128,128], index: 1, kind: input, shape index: {}]
  %s2 = inlined_call_operand.vmem [shape: f32[1,128], index: 2, kind: input, shape index: {}]
  %s3 = inlined_call_operand.hbm [shape: f32[8,128], index: 3, kind: output, shape index: {}]
  %s4 = sld [smem:[#allocation0]]
  $region38: #{tpu_custom_call.1} parent=0
    _
  %s6 = ssub.s32 1, %s4
  %s7 = scalar_select 0, %s6, %s4
  $region1: #{tpu_custom_call.1} parent=0
    #allocation3 [shape = 'u8[4096]{0}', space=vmem, size = 0x1000, scoped, tag = 'input window, operand 0, single buffered']
    #allocation4 [shape = 's32[1]{0}', space=sflag, size = 0x4, scoped, tag = 'scoped memory for tpu_custom_call.1']
    #allocation5 [shape = 's32[1]{0}', space=sflag, size = 0x4, scoped, tag = 'scoped memory for tpu_custom_call.1']
    #allocation6 [shape = 'u8[65536]{0}', space=vmem, size = 0x10000, scoped, tag = 'input window, operand 1, single buffered']
    #allocation7 [shape = 's32[1]{0}', space=sflag, size = 0x4, scoped, tag = 'scoped memory for tpu_custom_call.1']
    #allocation8 [shape = 'u8[4096]{0}', space=vmem, size = 0x1000, scoped, tag = 'output window, operand 0, single buffered']
    %8 = vsyncpa [#allocation4], 0
    %9 = vsyncpa [#allocation7], 0
    %10 = vsyncpa [#allocation5], 0
    // Predicated region
    $region2: #{tpu_custom_call.1} parent=1 // pred_check
      _
    $region3: #{tpu_custom_call.1} parent=1 // pred_check_branch
      %12 = sbr.rel (0) target = $region5
    $region4: #{tpu_custom_call.1} parent=1 // pred_region
      %s14 = ssub.s32 128, 128
      %15 = vsyncadd [#allocation4], %s14
      %s17 = sshll.u32 [#allocation3], 4
      %s18 = int_to_ptr.vmem [resolvable:$true] %s17
      %20 = dma.hbm_to_vmem [thread:$0]  %s0, 128, %s18, [#allocation4]
    $region5: #{tpu_custom_call.1} parent=1 // pred_fallthru
      _
    // Predicated region
    $region6: #{tpu_custom_call.1} parent=1 // pred_check
      _
    $region7: #{tpu_custom_call.1} parent=1 // pred_check_branch
      %22 = sbr.rel (0) target = $region9
    $region8: #{tpu_custom_call.1} parent=1 // pred_region
      %s24 = ssub.s32 2048, 2048
      %25 = vsyncadd [#allocation7], %s24
      %s26 = sshll.u32 [#allocation6], 4
      %s27 = int_to_ptr.vmem [resolvable:$true] %s26
      %32 = dma.hbm_to_vmem [thread:$0]  %s1, 2048, %s27, [#allocation7], 128, 128, 8
    $region9: #{tpu_custom_call.1} parent=1 // pred_fallthru
      _
    // Predicated region
    $region10: #{tpu_custom_call.1} parent=1 // pred_check
      _
    $region11: #{tpu_custom_call.1} parent=1 // pred_check_branch
      %34 = sbr.rel (0) target = $region13
    $region12: #{tpu_custom_call.1} parent=1 // pred_region
      _
    $region13: #{tpu_custom_call.1} parent=1 // pred_fallthru
      _
    // Predicated region
    $region14: #{tpu_custom_call.1} parent=1 // pred_check
      _
    $region15: #{tpu_custom_call.1} parent=1 // pred_check_branch
      %36 = sbr.rel (0) target = $region17
    $region16: #{tpu_custom_call.1} parent=1 // pred_region
      %37 = dma.done [#allocation4], 128
    $region17: #{tpu_custom_call.1} parent=1 // pred_fallthru
      _
    // Predicated region
    $region18: #{tpu_custom_call.1} parent=1 // pred_check
      _
    $region19: #{tpu_custom_call.1} parent=1 // pred_check_branch
      %39 = sbr.rel (0) target = $region21
    $region20: #{tpu_custom_call.1} parent=1 // pred_region
      %40 = dma.done [#allocation7], 2048
    $region21: #{tpu_custom_call.1} parent=1 // pred_fallthru
      _
    %p41 = scmp.eq.s32.totalorder 0, 0
    // Predicated region
    $region22: #{tpu_custom_call.1} parent=1 // pred_check
      %p42 = pneg %p41
    $region23: #{tpu_custom_call.1} parent=1 // pred_check_branch
      %44 = sbr.rel (%p42) target = $region25
    $region24: #{tpu_custom_call.1} parent=1 // pred_region
      %45 = vst [vmem:[#allocation2] sm:$0xff] 0.0
    $region25: #{tpu_custom_call.1} parent=1 // pred_fallthru
      _
    %v46 = vld [vmem:[#allocation3] sm:$0xff]
    %v47 = vld [vmem:[#allocation6] sm:$0xff]
    %v48 = vld [vmem:[#allocation6 + $0x8] sm:$0xff]
    %v49 = vld [vmem:[#allocation6 + $0x10] sm:$0xff]
    %v50 = vld [vmem:[#allocation6 + $0x18] sm:$0xff]
    %v51 = vld [vmem:[#allocation6 + $0x20] sm:$0xff]
    %v52 = vld [vmem:[#allocation6 + $0x28] sm:$0xff]
    %v53 = vld [vmem:[#allocation6 + $0x30] sm:$0xff]
    %v54 = vld [vmem:[#allocation6 + $0x38] sm:$0xff]
    %v55 = vld [vmem:[#allocation6 + $0x40] sm:$0xff]
    %v56 = vld [vmem:[#allocation6 + $0x48] sm:$0xff]
    %v57 = vld [vmem:[#allocation6 + $0x50] sm:$0xff]
    %v58 = vld [vmem:[#allocation6 + $0x58] sm:$0xff]
    %v59 = vld [vmem:[#allocation6 + $0x60] sm:$0xff]
    %v60 = vld [vmem:[#allocation6 + $0x68] sm:$0xff]
    %v61 = vld [vmem:[#allocation6 + $0x70] sm:$0xff]
    %v62 = vld [vmem:[#allocation6 + $0x78] sm:$0xff]
    %v63 = vld [vmem:[#allocation2] sm:$0xff]
    %64 = vmatprep.subr.mxu0 0.0
    %65 = vmatpush1.msra.mxu0 %v62
    %66 = vmatprep.subr.mxu0 0.0
    %67 = vmatpush1.msra.mxu0 %v61
    %68 = vmatprep.subr.mxu0 0.0
    %69 = vmatpush1.msra.mxu0 %v60
    %70 = vmatprep.subr.mxu0 0.0
    %71 = vmatpush1.msra.mxu0 %v59
    %72 = vmatprep.subr.mxu0 0.0
    %73 = vmatpush1.msra.mxu0 %v58
    %74 = vmatprep.subr.mxu0 0.0
    %75 = vmatpush1.msra.mxu0 %v57
    %76 = vmatprep.subr.mxu0 0.0
    %77 = vmatpush1.msra.mxu0 %v56
    %78 = vmatprep.subr.mxu0 0.0
    %79 = vmatpush1.msra.mxu0 %v55
    %80 = vmatprep.subr.mxu0 0.0
    %81 = vmatpush1.msra.mxu0 %v54
    %82 = vmatprep.subr.mxu0 0.0
    %83 = vmatpush1.msra.mxu0 %v53
    %84 = vmatprep.subr.mxu0 0.0
    %85 = vmatpush1.msra.mxu0 %v52
    %86 = vmatprep.subr.mxu0 0.0
    %87 = vmatpush1.msra.mxu0 %v51
    %88 = vmatprep.subr.mxu0 0.0
    %89 = vmatpush1.msra.mxu0 %v50
    %90 = vmatprep.subr.mxu0 0.0
    %91 = vmatpush1.msra.mxu0 %v49
    %92 = vmatprep.subr.mxu0 0.0
    %93 = vmatpush1.msra.mxu0 %v48
    %94 = vmatprep.subr.mxu0 0.0
    %95 = vmatpush1.msra.mxu0 %v47
    %96 = vmatprep.subr.mxu0 0.0
    %97 = vmatpush2.msra.mxu0 0.0
    %98 = vmatprep.subr.mxu0 0.0
    %99 = vmatpush2.msra.mxu0 0.0
    %100 = vmatprep.subr.mxu0 0.0
    %101 = vmatpush2.msra.mxu0 0.0
    %102 = vmatprep.subr.mxu0 0.0
    %103 = vmatpush2.msra.mxu0 0.0
    %104 = vmatprep.subr.mxu0 0.0
    %105 = vmatpush2.msra.mxu0 0.0
    %106 = vmatprep.subr.mxu0 0.0
    %107 = vmatpush2.msra.mxu0 0.0
    %108 = vmatprep.subr.mxu0 0.0
    %109 = vmatpush2.msra.mxu0 0.0
    %110 = vmatprep.subr.mxu0 0.0
    %111 = vmatpush2.msra.mxu0 0.0
    %112 = vmatprep.subr.mxu0 0.0
    %113 = vmatpush2.msra.mxu0 0.0
    %114 = vmatprep.subr.mxu0 0.0
    %115 = vmatpush2.msra.mxu0 0.0
    %116 = vmatprep.subr.mxu0 0.0
    %117 = vmatpush2.msra.mxu0 0.0
    %118 = vmatprep.subr.mxu0 0.0
    %119 = vmatpush2.msra.mxu0 0.0
    %120 = vmatprep.subr.mxu0 0.0
    %121 = vmatpush2.msra.mxu0 0.0
    %122 = vmatprep.subr.mxu0 0.0
    %123 = vmatpush2.msra.mxu0 0.0
    %124 = vmatprep.subr.mxu0 0.0
    %125 = vmatpush2.msra.mxu0 0.0
    %126 = vmatprep.subr.mxu0 0.0
    %127 = vmatpush2.msra.mxu0 0.0
    %128 = vmatprep.mubr.f32.mxu0 0.0
    %129 = vmatmul.mubr.f32.gmra.mxu0 %v46
    %v130 = vpop.f32.mrf.mxu0
    %v131 = vadd.f32 0.0, %v130
    %v132 = vpop.f32.mrf.mxu0
    %133 = vdwg.mxu0
    %v134 = vadd.f32 %v63, %v131
    %135 = vst [vmem:[#allocation2] sm:$0xff] %v134
    // Predicated region
    $region26: #{tpu_custom_call.1} parent=1 // pred_check
      %p136 = pneg %p41
    $region27: #{tpu_custom_call.1} parent=1 // pred_check_branch
      %138 = sbr.rel (%p136) target = $region29
    $region28: #{tpu_custom_call.1} parent=1 // pred_region
      %v139 = vld [vmem:[#allocation2] sm:$0xff]
      %v140 = vld [vmem:[%s2] sm:$0x1]
      %v142 = vlaneseq
      %v143 = vshrl.u32 %v142, 7
      %v144 = vsub.s32 0, %v143
      %v145 = vrot.slane %v140, %v144
      %v147 = vadd.f32 %v139, %v145
      %148 = vst [vmem:[#allocation8] sm:$0xff] %v147
    $region29: #{tpu_custom_call.1} parent=1 // pred_fallthru
      _
    // Predicated region
    $region30: #{tpu_custom_call.1} parent=1 // pred_check
      _
    $region31: #{tpu_custom_call.1} parent=1 // pred_check_branch
      %150 = sbr.rel (0) target = $region33
    $region32: #{tpu_custom_call.1} parent=1 // pred_region
      %s152 = ssub.s32 128, 128
      %153 = vsyncadd [#allocation5], %s152
      %s155 = sshll.u32 [#allocation8], 4
      %s156 = int_to_ptr.vmem [resolvable:$true] %s155
      %158 = dma.vmem_to_hbm [thread:$0]  %s156, 128, %s3, [#allocation5]
    $region33: #{tpu_custom_call.1} parent=1 // pred_fallthru
      _
    // Predicated region
    $region34: #{tpu_custom_call.1} parent=1 // pred_check
      _
    $region35: #{tpu_custom_call.1} parent=1 // pred_check_branch
      %160 = sbr.rel (0) target = $region37
    $region36: #{tpu_custom_call.1} parent=1 // pred_region
      %161 = dma.done [#allocation5], 128
    $region37: #{tpu_custom_call.1} parent=1 // pred_fallthru
      _
    %162 = vsyncpa [#allocation4], 1
    %163 = vsyncpa [#allocation7], 1
    %164 = vsyncpa [#allocation5], 1

</llo_original>
